<compile_context>
chip_gen: v7x
topology: tpu7x:2x2x1
jax: 0.10.0
libtpu: 0.0.40
codegen_flags: <defaults>
</compile_context>

<pallas_src>
import math
from functools import partial

import jax
import jax.numpy as jnp
from jax.experimental import pallas as pl
from jax.experimental.pallas import tpu as pltpu


VMEM_SPEC = pl.BlockSpec(memory_space=pltpu.MemorySpace.VMEM)


# ------------------------------ kernel -------------------------------------- #

def _attention_kernel(has_mask, scale, *refs):
    if has_mask:
        q_ref, k_ref, v_ref, m_ref, av_ref, ap_ref = refs
    else:
        q_ref, k_ref, v_ref, av_ref, ap_ref = refs
        m_ref = None

    # scores: [BH, Tq, Tk]  (batched matmul -> einsum; jnp.dot is not batched)
    a = jnp.einsum(
        "bqd,bkd->bqk", q_ref[...], k_ref[...],
        preferred_element_type=jnp.float32,
    ) * jnp.float32(scale)

    if m_ref is not None:
        # masked_fill_(attn_mask, -1e9): mask==True -> -1e9 (after scaling, like PyTorch)
        a = jnp.where(m_ref[...] > 0.5, jnp.float32(-1e9), a)

    # numerically-stable softmax along the last axis (matches torch.softmax)
    a_max = jnp.max(a, axis=-1, keepdims=True)
    e = jnp.exp(a - a_max)
    denom = jnp.sum(e, axis=-1, keepdims=True)
    p = e * pl.reciprocal(denom)            # exact reciprocal on the EUP

    ap_ref[...] = p.astype(ap_ref.dtype)

    # TODO(synk): nn.Dropout(config.dropout) on attn_p (training mode) not modeled;
    #             eval-mode dropout is the identity, which is what is implemented.
    av_ref[...] = jnp.einsum(
        "bqk,bkd->bqd", p, v_ref[...],
        preferred_element_type=jnp.float32,
    ).astype(av_ref.dtype)


# ------------------------------ wrapper ------------------------------------- #

def attention(Q, K, V, attn_mask=None):
    """Fused Attention forward. Q/K: [..., T, D], V: [..., Tk, Dv].

    Returns (attn_v, attn_p) exactly like the PyTorch module.
    """
    Q = Q.astype(jnp.float32)
    K = K.astype(jnp.float32)   # mirrors K.transpose(-1, -2).float()
    V = V.astype(jnp.float32)

    *lead, Tq, D = Q.shape
    Tk = K.shape[-2]
    Dv = V.shape[-1]
    BH = 1
    for s in lead:
        BH *= s

    # flatten leading (batch, heads, ...) dims — metadata-only reshape on contiguous data
    q3 = Q.reshape(BH, Tq, D)
    k3 = K.reshape(BH, Tk, D)
    v3 = V.reshape(BH, Tk, Dv)

    scale = 1.0 / math.sqrt(D)
    has_mask = attn_mask is not None

    args = [q3, k3, v3]
    if has_mask:
        m3 = jnp.broadcast_to(attn_mask, (*lead, Tq, Tk)).astype(jnp.float32)
        args.append(m3.reshape(BH, Tq, Tk))

    attn_v, attn_p = pl.pallas_call(
        partial(_attention_kernel, has_mask, scale),
        out_shape=(
            jax.ShapeDtypeStruct((BH, Tq, Dv), jnp.float32),
            jax.ShapeDtypeStruct((BH, Tq, Tk), jnp.float32),
        ),
        in_specs=[VMEM_SPEC] * len(args),
        out_specs=(VMEM_SPEC, VMEM_SPEC),
    )(*args)

    return attn_v.reshape(*lead, Tq, Dv), attn_p.reshape(*lead, Tq, Tk)


# --------------------------------- main -------------------------------------- #

if __name__ == "__main__":
    B, H, T, D = 2, 2, 8, 32

    root = jax.random.PRNGKey(0)
    kq, kk, kv = jax.random.split(root, 3)
    Q = jax.random.normal(kq, (B, H, T, D), jnp.float32)
    K = jax.random.normal(kk, (B, H, T, D), jnp.float32)
    V = jax.random.normal(kv, (B, H, T, D), jnp.float32)

    # attn_mask: True = masked (causal upper triangle), broadcast over batch/heads
    causal = jnp.triu(jnp.ones((T, T), dtype=bool), k=1)
    attn_mask = jnp.broadcast_to(causal, (B, H, T, T))

    attn_v, attn_p = attention(Q, K, V, attn_mask)
    jax.block_until_ready((attn_v, attn_p))

    assert attn_v.shape == (B, H, T, D)
    assert attn_p.shape == (B, H, T, T)

    # pure-JAX reference (loose tolerance: MXU f32 matmul precision may differ from XLA default)
    a_ref = jnp.einsum("bhqd,bhkd->bhqk", Q, K) / math.sqrt(D)
    a_ref = jnp.where(attn_mask, jnp.float32(-1e9), a_ref)
    p_ref = jax.nn.softmax(a_ref, axis=-1)
    v_ref = jnp.einsum("bhqk,bhkd->bhqd", p_ref, V)
    assert bool(jnp.all(jnp.isfinite(attn_v))) and bool(jnp.all(jnp.isfinite(attn_p)))
    assert jnp.allclose(attn_p, p_ref, atol=5e-2, rtol=5e-2)
    assert jnp.allclose(attn_v, v_ref, atol=5e-2, rtol=5e-2)

    # no-mask path (attn_mask=None) also runs through the fused kernel
    attn_v2, attn_p2 = attention(Q, K, V)
    jax.block_until_ready((attn_v2, attn_p2))
    assert attn_v2.shape == (B, H, T, D) and attn_p2.shape == (B, H, T, T)

    p2_ref = jax.nn.softmax(jnp.einsum("bhqd,bhkd->bhqk", Q, K) / math.sqrt(D), axis=-1)
    assert jnp.allclose(attn_p2, p2_ref, atol=5e-2, rtol=5e-2)

    print("KERNEL_OK")
</pallas_src>

<mosaic_0001>
module attributes {stable_mosaic.version = 11 : i64} {
  func.func @_attention_kernel(%arg0: memref<4x8x32xf32, #tpu.memory_space<vmem>>, %arg1: memref<4x8x32xf32, #tpu.memory_space<vmem>>, %arg2: memref<4x8x32xf32, #tpu.memory_space<vmem>>, %arg3: memref<4x8x8xf32, #tpu.memory_space<vmem>>, %arg4: memref<4x8x32xf32, #tpu.memory_space<vmem>>, %arg5: memref<4x8x8xf32, #tpu.memory_space<vmem>>) attributes {dimension_semantics = [], scalar_prefetch = 0 : i64, scratch_operands = 0 : i64, tpu.core_type = #tpu.core_type<tc>} {
    %c0 = arith.constant 0 : index
    %c0_0 = arith.constant 0 : index
    %c0_1 = arith.constant 0 : index
    %0 = vector.load %arg0[%c0, %c0_0, %c0_1] : memref<4x8x32xf32, #tpu.memory_space<vmem>>, vector<4x8x32xf32>
    %c0_2 = arith.constant 0 : index
    %c0_3 = arith.constant 0 : index
    %c0_4 = arith.constant 0 : index
    %1 = vector.load %arg1[%c0_2, %c0_3, %c0_4] : memref<4x8x32xf32, #tpu.memory_space<vmem>>, vector<4x8x32xf32>
    "tpu.trace_start"() <{level = 10 : i32, message = "bqd,bkd->bqk"}> : () -> ()
    %cst = arith.constant dense<0.000000e+00> : vector<4x8x8xf32>
    %2 = tpu.matmul %0, %1, %cst {dimension_numbers = #tpu.dot_dimension_numbers<[2], [2], [1], [1], [0, 0, 0, 1, 1, 1], [0], [0]>} : vector<4x8x32xf32>, vector<4x8x32xf32>, vector<4x8x8xf32> -> vector<4x8x8xf32>
    "tpu.trace_stop"() : () -> ()
    %cst_5 = arith.constant 0.176776692 : f32
    %3 = vector.broadcast %cst_5 : f32 to vector<4x8x8xf32>
    %4 = arith.mulf %2, %3 : vector<4x8x8xf32>
    %c0_6 = arith.constant 0 : index
    %c0_7 = arith.constant 0 : index
    %c0_8 = arith.constant 0 : index
    %5 = vector.load %arg3[%c0_6, %c0_7, %c0_8] : memref<4x8x8xf32, #tpu.memory_space<vmem>>, vector<4x8x8xf32>
    %cst_9 = arith.constant 5.000000e-01 : f32
    %6 = vector.broadcast %cst_9 : f32 to vector<4x8x8xf32>
    %7 = arith.cmpf ogt, %5, %6 : vector<4x8x8xf32>
    %cst_10 = arith.constant -1.000000e+09 : f32
    %8 = vector.broadcast %cst_10 : f32 to vector<4x8x8xf32>
    %9 = arith.select %7, %8, %4 : vector<4x8x8xi1>, vector<4x8x8xf32>
    %cst_11 = arith.constant dense<0xFF800000> : vector<4x8xf32>
    %10 = vector.multi_reduction <maximumf>, %9, %cst_11 [2] : vector<4x8x8xf32> to vector<4x8xf32>
    %11 = vector.shape_cast %10 : vector<4x8xf32> to vector<4x8x1xf32>
    %12 = vector.broadcast %11 : vector<4x8x1xf32> to vector<4x8x8xf32>
    %13 = arith.subf %9, %12 : vector<4x8x8xf32>
    %14 = math.exp %13 : vector<4x8x8xf32>
    %cst_12 = arith.constant dense<0.000000e+00> : vector<4x8xf32>
    %15 = vector.multi_reduction <add>, %14, %cst_12 [2] : vector<4x8x8xf32> to vector<4x8xf32>
    %16 = vector.shape_cast %15 : vector<4x8xf32> to vector<4x8x1xf32>
    %17 = tpu.reciprocal %16 : vector<4x8x1xf32> -> vector<4x8x1xf32>
    %18 = vector.broadcast %17 : vector<4x8x1xf32> to vector<4x8x8xf32>
    %19 = arith.mulf %14, %18 : vector<4x8x8xf32>
    %c0_13 = arith.constant 0 : index
    %c0_14 = arith.constant 0 : index
    %c0_15 = arith.constant 0 : index
    %20 = vector.load %arg5[%c0_13, %c0_14, %c0_15] : memref<4x8x8xf32, #tpu.memory_space<vmem>>, vector<4x8x8xf32>
    tpu.vector_store %arg5[%c0_13, %c0_14, %c0_15], %19 {strides = array<i32>} : memref<4x8x8xf32, #tpu.memory_space<vmem>>, vector<4x8x8xf32>,
    %c0_16 = arith.constant 0 : index
    %c0_17 = arith.constant 0 : index
    %c0_18 = arith.constant 0 : index
    %21 = vector.load %arg2[%c0_16, %c0_17, %c0_18] : memref<4x8x32xf32, #tpu.memory_space<vmem>>, vector<4x8x32xf32>
    "tpu.trace_start"() <{level = 10 : i32, message = "bqk,bkd->bqd"}> : () -> ()
    %cst_19 = arith.constant dense<0.000000e+00> : vector<4x8x32xf32>
    %22 = tpu.matmul %19, %21, %cst_19 {dimension_numbers = #tpu.dot_dimension_numbers<[2], [1], [1], [2], [0, 0, 0, 1, 1, 2], [0], [0]>} : vector<4x8x8xf32>, vector<4x8x32xf32>, vector<4x8x32xf32> -> vector<4x8x32xf32>
    "tpu.trace_stop"() : () -> ()
    %c0_20 = arith.constant 0 : index
    %c0_21 = arith.constant 0 : index
    %c0_22 = arith.constant 0 : index
    %23 = vector.load %arg4[%c0_20, %c0_21, %c0_22] : memref<4x8x32xf32, #tpu.memory_space<vmem>>, vector<4x8x32xf32>
    tpu.vector_store %arg4[%c0_20, %c0_21, %c0_22], %22 {strides = array<i32>} : memref<4x8x32xf32, #tpu.memory_space<vmem>>, vector<4x8x32xf32>,
    return
  }
}

</mosaic_0001>

<llo_original>
// kernel: tpu_custom_call.1
$region0: #{tpu_custom_call.1}
  #allocation0 [shape = 'u32[]', space=smem, size = 0x4, offset = 0x4, fixed_abs, tag = 'smem constant byte address 0x4 - core index']
  #allocation1 [shape = 'u32[144,128]{1,0:T(1,128)}', space=vmem, size = 0x12000, scoped, tag = 'internal scratch']
  %s0 = inlined_call_operand.hbm [shape: f32[4,8,32], index: 0, kind: input, shape index: {}]
  %s1 = inlined_call_operand.hbm [shape: f32[4,8,32], index: 1, kind: input, shape index: {}]
  %s2 = inlined_call_operand.hbm [shape: f32[4,8,32], index: 2, kind: input, shape index: {}]
  %s3 = inlined_call_operand.hbm [shape: f32[4,8,8], index: 3, kind: input, shape index: {}]
  %s4 = inlined_call_operand.hbm [shape: f32[4,8,32], index: 4, kind: output, shape index: {0}]
  %s5 = inlined_call_operand.hbm [shape: f32[4,8,8], index: 5, kind: output, shape index: {1}]
  %6 = xla_tuple %s4, %s5
  %s7 = sld [smem:[#allocation0]]
  $region50: #{tpu_custom_call.1} parent=0
    _
  %s9 = ssub.s32 1, %s7
  %s10 = scalar_select 0, %s9, %s7
  $region1: #{tpu_custom_call.1} parent=0
    #allocation2 [shape = 'u8[16384]{0}', space=vmem, size = 0x4000, scoped, tag = 'input window, operand 0, single buffered']
    #allocation3 [shape = 's32[1]{0}', space=sflag, size = 0x4, scoped, tag = 'scoped memory for tpu_custom_call.1']
    #allocation4 [shape = 's32[1]{0}', space=sflag, size = 0x4, scoped, tag = 'scoped memory for tpu_custom_call.1']
    #allocation5 [shape = 'u8[16384]{0}', space=vmem, size = 0x4000, scoped, tag = 'input window, operand 1, single buffered']
    #allocation6 [shape = 's32[1]{0}', space=sflag, size = 0x4, scoped, tag = 'scoped memory for tpu_custom_call.1']
    #allocation7 [shape = 'u8[16384]{0}', space=vmem, size = 0x4000, scoped, tag = 'input window, operand 2, single buffered']
    #allocation8 [shape = 'u8[16384]{0}', space=vmem, size = 0x4000, scoped, tag = 'input window, operand 3, single buffered']
    #allocation9 [shape = 's32[1]{0}', space=sflag, size = 0x4, scoped, tag = 'scoped memory for tpu_custom_call.1']
    #allocation10 [shape = 'u8[16384]{0}', space=vmem, size = 0x4000, scoped, tag = 'output window, operand 0, single buffered']
    #allocation11 [shape = 'u8[16384]{0}', space=vmem, size = 0x4000, scoped, tag = 'output window, operand 1, single buffered']
    #allocation12 [shape = 's32[1]{0}', space=sflag, size = 0x4, scoped, tag = 'scoped memory for tpu_custom_call.1']
    %11 = vsyncpa [#allocation3], 0
    %12 = vsyncpa [#allocation6], 0
    %13 = vsyncpa [#allocation9], 0
    %14 = vsyncpa [#allocation4], 0
    %15 = vsyncpa [#allocation12], 0
    // Predicated region
    $region2: #{tpu_custom_call.1} parent=1 // pred_check
      _
    $region3: #{tpu_custom_call.1} parent=1 // pred_check_branch
      %17 = sbr.rel (0) target = $region5
    $region4: #{tpu_custom_call.1} parent=1 // pred_region
      %s19 = ssub.s32 512, 512
      %20 = vsyncadd [#allocation3], %s19
      %s21 = sshll.u32 [#allocation2], 4
      %s22 = int_to_ptr.vmem [resolvable:$true] %s21
      %27 = dma.hbm_to_vmem [thread:$0]  %s0, 512, %s22, [#allocation3], 128, 128, 8
    $region5: #{tpu_custom_call.1} parent=1 // pred_fallthru
      _
    // Predicated region
    $region6: #{tpu_custom_call.1} parent=1 // pred_check
      _
    $region7: #{tpu_custom_call.1} parent=1 // pred_check_branch
      %29 = sbr.rel (0) target = $region9
    $region8: #{tpu_custom_call.1} parent=1 // pred_region
      %s31 = ssub.s32 512, 512
      %32 = vsyncadd [#allocation6], %s31
      %s33 = sshll.u32 [#allocation5], 4
      %s34 = int_to_ptr.vmem [resolvable:$true] %s33
      %39 = dma.hbm_to_vmem [thread:$0]  %s1, 512, %s34, [#allocation6], 128, 128, 8
    $region9: #{tpu_custom_call.1} parent=1 // pred_fallthru
      _
    // Predicated region
    $region10: #{tpu_custom_call.1} parent=1 // pred_check
      _
    $region11: #{tpu_custom_call.1} parent=1 // pred_check_branch
      %41 = sbr.rel (0) target = $region13
    $region12: #{tpu_custom_call.1} parent=1 // pred_region
      %s43 = ssub.s32 512, 512
      %44 = vsyncadd [#allocation6], %s43
      %s45 = sshll.u32 [#allocation7], 4
      %s46 = int_to_ptr.vmem [resolvable:$true] %s45
      %51 = dma.hbm_to_vmem [thread:$0]  %s2, 512, %s46, [#allocation6], 128, 128, 8
    $region13: #{tpu_custom_call.1} parent=1 // pred_fallthru
      _
    // Predicated region
    $region14: #{tpu_custom_call.1} parent=1 // pred_check
      _
    $region15: #{tpu_custom_call.1} parent=1 // pred_check_branch
      %53 = sbr.rel (0) target = $region17
    $region16: #{tpu_custom_call.1} parent=1 // pred_region
      %s55 = ssub.s32 512, 512
      %56 = vsyncadd [#allocation9], %s55
      %s57 = sshll.u32 [#allocation8], 4
      %s58 = int_to_ptr.vmem [resolvable:$true] %s57
      %63 = dma.hbm_to_vmem [thread:$0]  %s3, 512, %s58, [#allocation9], 128, 128, 8
    $region17: #{tpu_custom_call.1} parent=1 // pred_fallthru
      _
    // Predicated region
    $region18: #{tpu_custom_call.1} parent=1 // pred_check
      _
    $region19: #{tpu_custom_call.1} parent=1 // pred_check_branch
      %65 = sbr.rel (0) target = $region21
    $region20: #{tpu_custom_call.1} parent=1 // pred_region
      %66 = dma.done [#allocation3], 512
    $region21: #{tpu_custom_call.1} parent=1 // pred_fallthru
      _
    // Predicated region
    $region22: #{tpu_custom_call.1} parent=1 // pred_check
      _
    $region23: #{tpu_custom_call.1} parent=1 // pred_check_branch
      %68 = sbr.rel (0) target = $region25
    $region24: #{tpu_custom_call.1} parent=1 // pred_region
      %69 = dma.done [#allocation6], 512
    $region25: #{tpu_custom_call.1} parent=1 // pred_fallthru
      _
    // Predicated region
    $region26: #{tpu_custom_call.1} parent=1 // pred_check
      _
    $region27: #{tpu_custom_call.1} parent=1 // pred_check_branch
      %71 = sbr.rel (0) target = $region29
    $region28: #{tpu_custom_call.1} parent=1 // pred_region
      %72 = dma.done [#allocation6], 512
    $region29: #{tpu_custom_call.1} parent=1 // pred_fallthru
      _
    // Predicated region
    $region30: #{tpu_custom_call.1} parent=1 // pred_check
      _
    $region31: #{tpu_custom_call.1} parent=1 // pred_check_branch
      %74 = sbr.rel (0) target = $region33
    $region32: #{tpu_custom_call.1} parent=1 // pred_region
      %75 = dma.done [#allocation9], 512
    $region33: #{tpu_custom_call.1} parent=1 // pred_fallthru
      _
    %v76 = vld [vmem:[#allocation2] sm:$0xff]
    %v77 = vld [vmem:[#allocation2 + $0x8] sm:$0xff]
    %v78 = vld [vmem:[#allocation2 + $0x10] sm:$0xff]
    %v79 = vld [vmem:[#allocation2 + $0x18] sm:$0xff]
    %v80 = vld [vmem:[#allocation5] sm:$0xff]
    %v81 = vld [vmem:[#allocation5 + $0x8] sm:$0xff]
    %v82 = vld [vmem:[#allocation5 + $0x10] sm:$0xff]
    %v83 = vld [vmem:[#allocation5 + $0x18] sm:$0xff]
    %vm84 = vcmask 261120
    %v86 = vsel %vm84, %v76, 0
    %v89 = vsel %vm84, %v80, 0
    %91 = vmatprep.subr.mxu0 0.0
    %92 = vmatpush1.xpose.msra.mxu0 %v89
    %93 = vmatprep.subr.mxu0 0.0
    %94 = vmatpush1.xpose.msra.mxu0 0.0
    %95 = vmatprep.subr.mxu0 0.0
    %96 = vmatpush1.xpose.msra.mxu0 0.0
    %97 = vmatprep.subr.mxu0 0.0
    %98 = vmatpush1.xpose.msra.mxu0 0.0
    %99 = vmatprep.subr.mxu0 0.0
    %100 = vmatpush1.xpose.msra.mxu0 0.0
    %101 = vmatprep.subr.mxu0 0.0
    %102 = vmatpush1.xpose.msra.mxu0 0.0
    %103 = vmatprep.subr.mxu0 0.0
    %104 = vmatpush1.xpose.msra.mxu0 0.0
    %105 = vmatprep.subr.mxu0 0.0
    %106 = vmatpush1.xpose.msra.mxu0 0.0
    %107 = vmatprep.subr.mxu0 0.0
    %108 = vmatpush1.xpose.msra.mxu0 0.0
    %109 = vmatprep.subr.mxu0 0.0
    %110 = vmatpush1.xpose.msra.mxu0 0.0
    %111 = vmatprep.subr.mxu0 0.0
    %112 = vmatpush1.xpose.msra.mxu0 0.0
    %113 = vmatprep.subr.mxu0 0.0
    %114 = vmatpush1.xpose.msra.mxu0 0.0
    %115 = vmatprep.subr.mxu0 0.0
    %116 = vmatpush1.xpose.msra.mxu0 0.0
    %117 = vmatprep.subr.mxu0 0.0
    %118 = vmatpush1.xpose.msra.mxu0 0.0
    %119 = vmatprep.subr.mxu0 0.0
    %120 = vmatpush1.xpose.msra.mxu0 0.0
    %121 = vmatprep.subr.mxu0 0.0
    %122 = vmatpush1.xpose.msra.mxu0 0.0
    %123 = vmatprep.subr.mxu0 0.0
    %124 = vmatpush1.xpose.msra.mxu0 0.0
    %125 = vmatprep.subr.mxu0 0.0
    %126 = vmatpush1.xpose.msra.mxu0 0.0
    %127 = vmatprep.subr.mxu0 0.0
    %128 = vmatpush1.xpose.msra.mxu0 0.0
    %129 = vmatprep.subr.mxu0 0.0
    %130 = vmatpush1.xpose.msra.mxu0 0.0
    %131 = vmatprep.subr.mxu0 0.0
    %132 = vmatpush1.xpose.msra.mxu0 0.0
    %133 = vmatprep.subr.mxu0 0.0
    %134 = vmatpush1.xpose.msra.mxu0 0.0
    %135 = vmatprep.subr.mxu0 0.0
    %136 = vmatpush1.xpose.msra.mxu0 0.0
    %137 = vmatprep.subr.mxu0 0.0
    %138 = vmatpush1.xpose.msra.mxu0 0.0
    %139 = vmatprep.subr.mxu0 0.0
    %140 = vmatpush1.xpose.msra.mxu0 0.0
    %141 = vmatprep.subr.mxu0 0.0
    %142 = vmatpush1.xpose.msra.mxu0 0.0
    %143 = vmatprep.subr.mxu0 0.0
    %144 = vmatpush1.xpose.msra.mxu0 0.0
    %145 = vmatprep.subr.mxu0 0.0
    %146 = vmatpush1.xpose.msra.mxu0 0.0
    %147 = vmatprep.subr.mxu0 0.0
    %148 = vmatpush1.xpose.msra.mxu0 0.0
    %149 = vmatprep.subr.mxu0 0.0
    %150 = vmatpush1.xpose.msra.mxu0 0.0
    %151 = vmatprep.subr.mxu0 0.0
    %152 = vmatpush1.xpose.msra.mxu0 0.0
    %153 = vmatprep.subr.mxu0 0.0
    %154 = vmatpush1.xpose.msra.mxu0 0.0
    %155 = vmatprep.mubr.f32.mxu0 0.0
    %156 = vmatmul.mubr.f32.gmra.mrb[0].mxu0 %v86
    %v157 = vpop.f32.mrb[0].mxu0
    %v158 = vadd.f32 0.0, %v157
    %v159 = vpop.f32.mrb[0].mxu0
    %160 = vdwg.mxu0
    %v162 = vsel %vm84, %v77, 0
    %v165 = vsel %vm84, %v81, 0
    %167 = vmatprep.subr.mxu0 0.0
    %168 = vmatpush1.xpose.msra.mxu0 %v165
    %169 = vmatprep.subr.mxu0 0.0
    %170 = vmatpush1.xpose.msra.mxu0 0.0
    %171 = vmatprep.subr.mxu0 0.0
    %172 = vmatpush1.xpose.msra.mxu0 0.0
    %173 = vmatprep.subr.mxu0 0.0
    %174 = vmatpush1.xpose.msra.mxu0 0.0
    %175 = vmatprep.subr.mxu0 0.0
    %176 = vmatpush1.xpose.msra.mxu0 0.0
    %177 = vmatprep.subr.mxu0 0.0
    %178 = vmatpush1.xpose.msra.mxu0 0.0
    %179 = vmatprep.subr.mxu0 0.0
    %180 = vmatpush1.xpose.msra.mxu0 0.0
    %181 = vmatprep.subr.mxu0 0.0
    %182 = vmatpush1.xpose.msra.mxu0 0.0
    %183 = vmatprep.subr.mxu0 0.0
    %184 = vmatpush1.xpose.msra.mxu0 0.0
    %185 = vmatprep.subr.mxu0 0.0
    %186 = vmatpush1.xpose.msra.mxu0 0.0
    %187 = vmatprep.subr.mxu0 0.0
    %188 = vmatpush1.xpose.msra.mxu0 0.0
    %189 = vmatprep.subr.mxu0 0.0
    %190 = vmatpush1.xpose.msra.mxu0 0.0
    %191 = vmatprep.subr.mxu0 0.0
    %192 = vmatpush1.xpose.msra.mxu0 0.0
    %193 = vmatprep.subr.mxu0 0.0
    %194 = vmatpush1.xpose.msra.mxu0 0.0
    %195 = vmatprep.subr.mxu0 0.0
    %196 = vmatpush1.xpose.msra.mxu0 0.0
    %197 = vmatprep.subr.mxu0 0.0
    %198 = vmatpush1.xpose.msra.mxu0 0.0
    %199 = vmatprep.subr.mxu0 0.0
    %200 = vmatpush1.xpose.msra.mxu0 0.0
    %201 = vmatprep.subr.mxu0 0.0
    %202 = vmatpush1.xpose.msra.mxu0 0.0
    %203 = vmatprep.subr.mxu0 0.0
    %204 = vmatpush1.xpose.msra.mxu0 0.0
    %205 = vmatprep.subr.mxu0 0.0
    %206 = vmatpush1.xpose.msra.mxu0 0.0
    %207 = vmatprep.subr.mxu0 0.0
    %208 = vmatpush1.xpose.msra.mxu0 0.0
    %209 = vmatprep.subr.mxu0 0.0
    %210 = vmatpush1.xpose.msra.mxu0 0.0
    %211 = vmatprep.subr.mxu0 0.0
    %212 = vmatpush1.xpose.msra.mxu0 0.0
    %213 = vmatprep.subr.mxu0 0.0
    %214 = vmatpush1.xpose.msra.mxu0 0.0
    %215 = vmatprep.subr.mxu0 0.0
    %216 = vmatpush1.xpose.msra.mxu0 0.0
    %217 = vmatprep.subr.mxu0 0.0
    %218 = vmatpush1.xpose.msra.mxu0 0.0
    %219 = vmatprep.subr.mxu0 0.0
    %220 = vmatpush1.xpose.msra.mxu0 0.0
    %221 = vmatprep.subr.mxu0 0.0
    %222 = vmatpush1.xpose.msra.mxu0 0.0
    %223 = vmatprep.subr.mxu0 0.0
    %224 = vmatpush1.xpose.msra.mxu0 0.0
    %225 = vmatprep.subr.mxu0 0.0
    %226 = vmatpush1.xpose.msra.mxu0 0.0
    %227 = vmatprep.subr.mxu0 0.0
    %228 = vmatpush1.xpose.msra.mxu0 0.0
    %229 = vmatprep.subr.mxu0 0.0
    %230 = vmatpush1.xpose.msra.mxu0 0.0
    %231 = vmatprep.mubr.f32.mxu0 0.0
    %232 = vmatmul.mubr.f32.gmra.mrb[0].mxu0 %v162
    %v233 = vpop.f32.mrb[0].mxu0
    %v234 = vadd.f32 0.0, %v233
    %v235 = vpop.f32.mrb[0].mxu0
    %236 = vdwg.mxu0
    %v238 = vsel %vm84, %v78, 0
    %v241 = vsel %vm84, %v82, 0
    %243 = vmatprep.subr.mxu0 0.0
    %244 = vmatpush1.xpose.msra.mxu0 %v241
    %245 = vmatprep.subr.mxu0 0.0
    %246 = vmatpush1.xpose.msra.mxu0 0.0
    %247 = vmatprep.subr.mxu0 0.0
    %248 = vmatpush1.xpose.msra.mxu0 0.0
    %249 = vmatprep.subr.mxu0 0.0
    %250 = vmatpush1.xpose.msra.mxu0 0.0
    %251 = vmatprep.subr.mxu0 0.0
    %252 = vmatpush1.xpose.msra.mxu0 0.0
    %253 = vmatprep.subr.mxu0 0.0
    %254 = vmatpush1.xpose.msra.mxu0 0.0
    %255 = vmatprep.subr.mxu0 0.0
    %256 = vmatpush1.xpose.msra.mxu0 0.0
    %257 = vmatprep.subr.mxu0 0.0
    %258 = vmatpush1.xpose.msra.mxu0 0.0
    %259 = vmatprep.subr.mxu0 0.0
    %260 = vmatpush1.xpose.msra.mxu0 0.0
    %261 = vmatprep.subr.mxu0 0.0
    %262 = vmatpush1.xpose.msra.mxu0 0.0
    %263 = vmatprep.subr.mxu0 0.0
    %264 = vmatpush1.xpose.msra.mxu0 0.0
    %265 = vmatprep.subr.mxu0 0.0
    %266 = vmatpush1.xpose.msra.mxu0 0.0
    %267 = vmatprep.subr.mxu0 0.0
    %268 = vmatpush1.xpose.msra.mxu0 0.0
    %269 = vmatprep.subr.mxu0 0.0
    %270 = vmatpush1.xpose.msra.mxu0 0.0
    %271 = vmatprep.subr.mxu0 0.0
    %272 = vmatpush1.xpose.msra.mxu0 0.0
    %273 = vmatprep.subr.mxu0 0.0
    %274 = vmatpush1.xpose.msra.mxu0 0.0
    %275 = vmatprep.subr.mxu0 0.0
    %276 = vmatpush1.xpose.msra.mxu0 0.0
    %277 = vmatprep.subr.mxu0 0.0
    %278 = vmatpush1.xpose.msra.mxu0 0.0
    %279 = vmatprep.subr.mxu0 0.0
    %280 = vmatpush1.xpose.msra.mxu0 0.0
    %281 = vmatprep.subr.mxu0 0.0
    %282 = vmatpush1.xpose.msra.mxu0 0.0
    %283 = vmatprep.subr.mxu0 0.0
    %284 = vmatpush1.xpose.msra.mxu0 0.0
    %285 = vmatprep.subr.mxu0 0.0
    %286 = vmatpush1.xpose.msra.mxu0 0.0
    %287 = vmatprep.subr.mxu0 0.0
    %288 = vmatpush1.xpose.msra.mxu0 0.0
    %289 = vmatprep.subr.mxu0 0.0
    %290 = vmatpush1.xpose.msra.mxu0 0.0
    %291 = vmatprep.subr.mxu0 0.0
    %292 = vmatpush1.xpose.msra.mxu0 0.0
    %293 = vmatprep.subr.mxu0 0.0
    %294 = vmatpush1.xpose.msra.mxu0 0.0
    %295 = vmatprep.subr.mxu0 0.0
    %296 = vmatpush1.xpose.msra.mxu0 0.0
    %297 = vmatprep.subr.mxu0 0.0
    %298 = vmatpush1.xpose.msra.mxu0 0.0
    %299 = vmatprep.subr.mxu0 0.0
    %300 = vmatpush1.xpose.msra.mxu0 0.0
    %301 = vmatprep.subr.mxu0 0.0
    %302 = vmatpush1.xpose.msra.mxu0 0.0
    %303 = vmatprep.subr.mxu0 0.0
    %304 = vmatpush1.xpose.msra.mxu0 0.0
    %305 = vmatprep.subr.mxu0 0.0
    %306 = vmatpush1.xpose.msra.mxu0 0.0
    %307 = vmatprep.mubr.f32.mxu0 0.0
    %308 = vmatmul.mubr.f32.gmra.mrb[0].mxu0 %v238
    %v309 = vpop.f32.mrb[0].mxu0
    %v310 = vadd.f32 0.0, %v309
    %v311 = vpop.f32.mrb[0].mxu0
    %312 = vdwg.mxu0
    %v314 = vsel %vm84, %v79, 0
    %v317 = vsel %vm84, %v83, 0
    %319 = vmatprep.subr.mxu0 0.0
    %320 = vmatpush1.xpose.msra.mxu0 %v317
    %321 = vmatprep.subr.mxu0 0.0
    %322 = vmatpush1.xpose.msra.mxu0 0.0
    %323 = vmatprep.subr.mxu0 0.0
    %324 = vmatpush1.xpose.msra.mxu0 0.0
    %325 = vmatprep.subr.mxu0 0.0
    %326 = vmatpush1.xpose.msra.mxu0 0.0
    %327 = vmatprep.subr.mxu0 0.0
    %328 = vmatpush1.xpose.msra.mxu0 0.0
    %329 = vmatprep.subr.mxu0 0.0
    %330 = vmatpush1.xpose.msra.mxu0 0.0
    %331 = vmatprep.subr.mxu0 0.0
    %332 = vmatpush1.xpose.msra.mxu0 0.0
    %333 = vmatprep.subr.mxu0 0.0
    %334 = vmatpush1.xpose.msra.mxu0 0.0
    %335 = vmatprep.subr.mxu0 0.0
    %336 = vmatpush1.xpose.msra.mxu0 0.0
    %337 = vmatprep.subr.mxu0 0.0
    %338 = vmatpush1.xpose.msra.mxu0 0.0
    %339 = vmatprep.subr.mxu0 0.0
    %340 = vmatpush1.xpose.msra.mxu0 0.0
    %341 = vmatprep.subr.mxu0 0.0
    %342 = vmatpush1.xpose.msra.mxu0 0.0
    %343 = vmatprep.subr.mxu0 0.0
    %344 = vmatpush1.xpose.msra.mxu0 0.0
    %345 = vmatprep.subr.mxu0 0.0
    %346 = vmatpush1.xpose.msra.mxu0 0.0
    %347 = vmatprep.subr.mxu0 0.0
    %348 = vmatpush1.xpose.msra.mxu0 0.0
    %349 = vmatprep.subr.mxu0 0.0
    %350 = vmatpush1.xpose.msra.mxu0 0.0
    %351 = vmatprep.subr.mxu0 0.0
    %352 = vmatpush1.xpose.msra.mxu0 0.0
    %353 = vmatprep.subr.mxu0 0.0
    %354 = vmatpush1.xpose.msra.mxu0 0.0
    %355 = vmatprep.subr.mxu0 0.0
    %356 = vmatpush1.xpose.msra.mxu0 0.0
    %357 = vmatprep.subr.mxu0 0.0
    %358 = vmatpush1.xpose.msra.mxu0 0.0
    %359 = vmatprep.subr.mxu0 0.0
    %360 = vmatpush1.xpose.msra.mxu0 0.0
    %361 = vmatprep.subr.mxu0 0.0
    %362 = vmatpush1.xpose.msra.mxu0 0.0
    %363 = vmatprep.subr.mxu0 0.0
    %364 = vmatpush1.xpose.msra.mxu0 0.0
    %365 = vmatprep.subr.mxu0 0.0
    %366 = vmatpush1.xpose.msra.mxu0 0.0
    %367 = vmatprep.subr.mxu0 0.0
    %368 = vmatpush1.xpose.msra.mxu0 0.0
    %369 = vmatprep.subr.mxu0 0.0
    %370 = vmatpush1.xpose.msra.mxu0 0.0
    %371 = vmatprep.subr.mxu0 0.0
    %372 = vmatpush1.xpose.msra.mxu0 0.0
    %373 = vmatprep.subr.mxu0 0.0
    %374 = vmatpush1.xpose.msra.mxu0 0.0
    %375 = vmatprep.subr.mxu0 0.0
    %376 = vmatpush1.xpose.msra.mxu0 0.0
    %377 = vmatprep.subr.mxu0 0.0
    %378 = vmatpush1.xpose.msra.mxu0 0.0
    %379 = vmatprep.subr.mxu0 0.0
    %380 = vmatpush1.xpose.msra.mxu0 0.0
    %381 = vmatprep.subr.mxu0 0.0
    %382 = vmatpush1.xpose.msra.mxu0 0.0
    %383 = vmatprep.mubr.f32.mxu0 0.0
    %384 = vmatmul.mubr.f32.gmra.mrb[0].mxu0 %v314
    %v385 = vpop.f32.mrb[0].mxu0
    %v386 = vadd.f32 0.0, %v385
    %v387 = vpop.f32.mrb[0].mxu0
    %388 = vdwg.mxu0
    %v389 = vmul.f32 %v158, 0.17677669
    %v390 = vmul.f32 %v234, 0.17677669
    %v391 = vmul.f32 %v310, 0.17677669
    %v392 = vmul.f32 %v386, 0.17677669
    %v393 = vld [vmem:[#allocation8] sm:$0xff]
    %v394 = vld [vmem:[#allocation8 + $0x8] sm:$0xff]
    %v395 = vld [vmem:[#allocation8 + $0x10] sm:$0xff]
    %v396 = vld [vmem:[#allocation8 + $0x18] sm:$0xff]
    %vm397 = vcmp.gt.f32.partialorder %v393, 0.5
    %vm398 = vcmp.gt.f32.partialorder %v394, 0.5
    %vm399 = vcmp.gt.f32.partialorder %v395, 0.5
    %vm400 = vcmp.gt.f32.partialorder %v396, 0.5
    %v401 = vsel %vm397, -1e+09, %v389
    %v402 = vsel %vm398, -1e+09, %v390
    %v403 = vsel %vm399, -1e+09, %v391
    %v404 = vsel %vm400, -1e+09, %v392
    %vm405 = vcmask 64512
    %v406 = vsel %vm405, %v401, -inf
    %407 = vmax.xlane.f32.xlu0 %v406
    %v408 = vpop.xlane.xlu0 %407
    %v409 = vsel %vm405, %v402, -inf
    %410 = vmax.xlane.f32.xlu0 %v409
    %v411 = vpop.xlane.xlu0 %410
    %v412 = vsel %vm405, %v403, -inf
    %413 = vmax.xlane.f32.xlu0 %v412
    %v414 = vpop.xlane.xlu0 %413
    %v415 = vsel %vm405, %v404, -inf
    %416 = vmax.xlane.f32.xlu0 %v415
    %v417 = vpop.xlane.xlu0 %416
    %v418 = vsub.f32 %v401, %v408
    %v419 = vsub.f32 %v402, %v411
    %v420 = vsub.f32 %v403, %v414
    %v421 = vsub.f32 %v404, %v417
    %v422 = vmul.f32 %v418, 1.442695
    %v423 = vpow.pop %v422
    %v424 = vmul.f32 %v419, 1.442695
    %v425 = vpow.pop %v424
    %v426 = vmul.f32 %v420, 1.442695
    %v427 = vpow.pop %v426
    %v428 = vmul.f32 %v421, 1.442695
    %v429 = vpow.pop %v428
    %v430 = vsel %vm405, %v423, 0.0
    %431 = vadd.xlane.f32.xlu0 %v430
    %v432 = vpop.xlane.xlu0 %431
    %v433 = vsel %vm405, %v425, 0.0
    %434 = vadd.xlane.f32.xlu0 %v433
    %v435 = vpop.xlane.xlu0 %434
    %v436 = vsel %vm405, %v427, 0.0
    %437 = vadd.xlane.f32.xlu0 %v436
    %v438 = vpop.xlane.xlu0 %437
    %v439 = vsel %vm405, %v429, 0.0
    %440 = vadd.xlane.f32.xlu0 %v439
    %v441 = vpop.xlane.xlu0 %440
    %v442 = vrcp.pop %v432
    %v443 = vrcp.pop %v435
    %v444 = vrcp.pop %v438
    %v445 = vrcp.pop %v441
    %v446 = vmul.f32 %v423, %v442
    %v447 = vmul.f32 %v425, %v443
    %v448 = vmul.f32 %v427, %v444
    %v449 = vmul.f32 %v429, %v445
    %450 = vst.msk [vmem:[#allocation11] sm:$0xff] %vm405, %v446
    %451 = vst.msk [vmem:[#allocation11 + $0x8] sm:$0xff] %vm405, %v447
    %452 = vst.msk [vmem:[#allocation11 + $0x10] sm:$0xff] %vm405, %v448
    %453 = vst.msk [vmem:[#allocation11 + $0x18] sm:$0xff] %vm405, %v449
    %v454 = vld [vmem:[#allocation7] sm:$0xff]
    %v455 = vld [vmem:[#allocation7 + $0x8] sm:$0xff]
    %v456 = vld [vmem:[#allocation7 + $0x10] sm:$0xff]
    %v457 = vld [vmem:[#allocation7 + $0x18] sm:$0xff]
    %v459 = vsel %vm405, %v446, 0
    %461 = vmatprep.subr.mxu0 0.0
    %462 = vmatpush1.msra.mxu0 %v454
    %463 = vmatprep.subr.mxu0 0.0
    %464 = vmatpush1.msra.mxu0 0.0
    %465 = vmatprep.subr.mxu0 0.0
    %466 = vmatpush1.msra.mxu0 0.0
    %467 = vmatprep.subr.mxu0 0.0
    %468 = vmatpush1.msra.mxu0 0.0
    %469 = vmatprep.subr.mxu0 0.0
    %470 = vmatpush1.msra.mxu0 0.0
    %471 = vmatprep.subr.mxu0 0.0
    %472 = vmatpush1.msra.mxu0 0.0
    %473 = vmatprep.subr.mxu0 0.0
    %474 = vmatpush1.msra.mxu0 0.0
    %475 = vmatprep.subr.mxu0 0.0
    %476 = vmatpush1.msra.mxu0 0.0
    %477 = vmatprep.subr.mxu0 0.0
    %478 = vmatpush1.msra.mxu0 0.0
    %479 = vmatprep.subr.mxu0 0.0
    %480 = vmatpush1.msra.mxu0 0.0
    %481 = vmatprep.subr.mxu0 0.0
    %482 = vmatpush1.msra.mxu0 0.0
    %483 = vmatprep.subr.mxu0 0.0
    %484 = vmatpush1.msra.mxu0 0.0
    %485 = vmatprep.subr.mxu0 0.0
    %486 = vmatpush1.msra.mxu0 0.0
    %487 = vmatprep.subr.mxu0 0.0
    %488 = vmatpush1.msra.mxu0 0.0
    %489 = vmatprep.subr.mxu0 0.0
    %490 = vmatpush1.msra.mxu0 0.0
    %491 = vmatprep.subr.mxu0 0.0
    %492 = vmatpush1.msra.mxu0 0.0
    %493 = vmatprep.subr.mxu0 0.0
    %494 = vmatpush1.msra.mxu0 0.0
    %495 = vmatprep.subr.mxu0 0.0
    %496 = vmatpush1.msra.mxu0 0.0
    %497 = vmatprep.subr.mxu0 0.0
    %498 = vmatpush1.msra.mxu0 0.0
    %499 = vmatprep.subr.mxu0 0.0
    %500 = vmatpush1.msra.mxu0 0.0
    %501 = vmatprep.subr.mxu0 0.0
    %502 = vmatpush1.msra.mxu0 0.0
    %503 = vmatprep.subr.mxu0 0.0
    %504 = vmatpush1.msra.mxu0 0.0
    %505 = vmatprep.subr.mxu0 0.0
    %506 = vmatpush1.msra.mxu0 0.0
    %507 = vmatprep.subr.mxu0 0.0
    %508 = vmatpush1.msra.mxu0 0.0
    %509 = vmatprep.subr.mxu0 0.0
    %510 = vmatpush1.msra.mxu0 0.0
    %511 = vmatprep.subr.mxu0 0.0
    %512 = vmatpush1.msra.mxu0 0.0
    %513 = vmatprep.subr.mxu0 0.0
    %514 = vmatpush1.msra.mxu0 0.0
    %515 = vmatprep.subr.mxu0 0.0
    %516 = vmatpush1.msra.mxu0 0.0
    %517 = vmatprep.subr.mxu0 0.0
    %518 = vmatpush1.msra.mxu0 0.0
    %519 = vmatprep.subr.mxu0 0.0
    %520 = vmatpush1.msra.mxu0 0.0
    %521 = vmatprep.subr.mxu0 0.0
    %522 = vmatpush1.msra.mxu0 0.0
    %523 = vmatprep.subr.mxu0 0.0
    %524 = vmatpush1.msra.mxu0 0.0
    %525 = vmatprep.mubr.f32.mxu0 0.0
    %526 = vmatmul.mubr.f32.gmra.mrb[0].mxu0 %v459
    %v527 = vpop.f32.mrb[0].mxu0
    %v528 = vadd.f32 0.0, %v527
    %v529 = vpop.f32.mrb[0].mxu0
    %530 = vdwg.mxu0
    %v532 = vsel %vm405, %v447, 0
    %534 = vmatprep.subr.mxu0 0.0
    %535 = vmatpush1.msra.mxu0 %v455
    %536 = vmatprep.subr.mxu0 0.0
    %537 = vmatpush1.msra.mxu0 0.0
    %538 = vmatprep.subr.mxu0 0.0
    %539 = vmatpush1.msra.mxu0 0.0
    %540 = vmatprep.subr.mxu0 0.0
    %541 = vmatpush1.msra.mxu0 0.0
    %542 = vmatprep.subr.mxu0 0.0
    %543 = vmatpush1.msra.mxu0 0.0
    %544 = vmatprep.subr.mxu0 0.0
    %545 = vmatpush1.msra.mxu0 0.0
    %546 = vmatprep.subr.mxu0 0.0
    %547 = vmatpush1.msra.mxu0 0.0
    %548 = vmatprep.subr.mxu0 0.0
    %549 = vmatpush1.msra.mxu0 0.0
    %550 = vmatprep.subr.mxu0 0.0
    %551 = vmatpush1.msra.mxu0 0.0
    %552 = vmatprep.subr.mxu0 0.0
    %553 = vmatpush1.msra.mxu0 0.0
    %554 = vmatprep.subr.mxu0 0.0
    %555 = vmatpush1.msra.mxu0 0.0
    %556 = vmatprep.subr.mxu0 0.0
    %557 = vmatpush1.msra.mxu0 0.0
    %558 = vmatprep.subr.mxu0 0.0
    %559 = vmatpush1.msra.mxu0 0.0
    %560 = vmatprep.subr.mxu0 0.0
    %561 = vmatpush1.msra.mxu0 0.0
    %562 = vmatprep.subr.mxu0 0.0
    %563 = vmatpush1.msra.mxu0 0.0
    %564 = vmatprep.subr.mxu0 0.0
    %565 = vmatpush1.msra.mxu0 0.0
    %566 = vmatprep.subr.mxu0 0.0
    %567 = vmatpush1.msra.mxu0 0.0
    %568 = vmatprep.subr.mxu0 0.0
    %569 = vmatpush1.msra.mxu0 0.0
    %570 = vmatprep.subr.mxu0 0.0
    %571 = vmatpush1.msra.mxu0 0.0
    %572 = vmatprep.subr.mxu0 0.0
    %573 = vmatpush1.msra.mxu0 0.0
    %574 = vmatprep.subr.mxu0 0.0
    %575 = vmatpush1.msra.mxu0 0.0
    %576 = vmatprep.subr.mxu0 0.0
    %577 = vmatpush1.msra.mxu0 0.0
    %578 = vmatprep.subr.mxu0 0.0
    %579 = vmatpush1.msra.mxu0 0.0
    %580 = vmatprep.subr.mxu0 0.0
    %581 = vmatpush1.msra.mxu0 0.0
    %582 = vmatprep.subr.mxu0 0.0
    %583 = vmatpush1.msra.mxu0 0.0
    %584 = vmatprep.subr.mxu0 0.0
    %585 = vmatpush1.msra.mxu0 0.0
    %586 = vmatprep.subr.mxu0 0.0
    %587 = vmatpush1.msra.mxu0 0.0
    %588 = vmatprep.subr.mxu0 0.0
    %589 = vmatpush1.msra.mxu0 0.0
    %590 = vmatprep.subr.mxu0 0.0
    %591 = vmatpush1.msra.mxu0 0.0
    %592 = vmatprep.subr.mxu0 0.0
    %593 = vmatpush1.msra.mxu0 0.0
    %594 = vmatprep.subr.mxu0 0.0
    %595 = vmatpush1.msra.mxu0 0.0
    %596 = vmatprep.subr.mxu0 0.0
    %597 = vmatpush1.msra.mxu0 0.0
    %598 = vmatprep.mubr.f32.mxu0 0.0
    %599 = vmatmul.mubr.f32.gmra.mrb[0].mxu0 %v532
    %v600 = vpop.f32.mrb[0].mxu0
    %v601 = vadd.f32 0.0, %v600
    %v602 = vpop.f32.mrb[0].mxu0
    %603 = vdwg.mxu0
    %v605 = vsel %vm405, %v448, 0
    %607 = vmatprep.subr.mxu0 0.0
    %608 = vmatpush1.msra.mxu0 %v456
    %609 = vmatprep.subr.mxu0 0.0
    %610 = vmatpush1.msra.mxu0 0.0
    %611 = vmatprep.subr.mxu0 0.0
    %612 = vmatpush1.msra.mxu0 0.0
    %613 = vmatprep.subr.mxu0 0.0
    %614 = vmatpush1.msra.mxu0 0.0
    %615 = vmatprep.subr.mxu0 0.0
    %616 = vmatpush1.msra.mxu0 0.0
    %617 = vmatprep.subr.mxu0 0.0
    %618 = vmatpush1.msra.mxu0 0.0
    %619 = vmatprep.subr.mxu0 0.0
    %620 = vmatpush1.msra.mxu0 0.0
    %621 = vmatprep.subr.mxu0 0.0
    %622 = vmatpush1.msra.mxu0 0.0
    %623 = vmatprep.subr.mxu0 0.0
    %624 = vmatpush1.msra.mxu0 0.0
    %625 = vmatprep.subr.mxu0 0.0
    %626 = vmatpush1.msra.mxu0 0.0
    %627 = vmatprep.subr.mxu0 0.0
    %628 = vmatpush1.msra.mxu0 0.0
    %629 = vmatprep.subr.mxu0 0.0
    %630 = vmatpush1.msra.mxu0 0.0
    %631 = vmatprep.subr.mxu0 0.0
    %632 = vmatpush1.msra.mxu0 0.0
    %633 = vmatprep.subr.mxu0 0.0
    %634 = vmatpush1.msra.mxu0 0.0
    %635 = vmatprep.subr.mxu0 0.0
    %636 = vmatpush1.msra.mxu0 0.0
    %637 = vmatprep.subr.mxu0 0.0
    %638 = vmatpush1.msra.mxu0 0.0
    %639 = vmatprep.subr.mxu0 0.0
    %640 = vmatpush1.msra.mxu0 0.0
    %641 = vmatprep.subr.mxu0 0.0
    %642 = vmatpush1.msra.mxu0 0.0
    %643 = vmatprep.subr.mxu0 0.0
    %644 = vmatpush1.msra.mxu0 0.0
    %645 = vmatprep.subr.mxu0 0.0
    %646 = vmatpush1.msra.mxu0 0.0
    %647 = vmatprep.subr.mxu0 0.0
    %648 = vmatpush1.msra.mxu0 0.0
    %649 = vmatprep.subr.mxu0 0.0
    %650 = vmatpush1.msra.mxu0 0.0
    %651 = vmatprep.subr.mxu0 0.0
    %652 = vmatpush1.msra.mxu0 0.0
    %653 = vmatprep.subr.mxu0 0.0
    %654 = vmatpush1.msra.mxu0 0.0
    %655 = vmatprep.subr.mxu0 0.0
    %656 = vmatpush1.msra.mxu0 0.0
    %657 = vmatprep.subr.mxu0 0.0
    %658 = vmatpush1.msra.mxu0 0.0
    %659 = vmatprep.subr.mxu0 0.0
    %660 = vmatpush1.msra.mxu0 0.0
    %661 = vmatprep.subr.mxu0 0.0
    %662 = vmatpush1.msra.mxu0 0.0
    %663 = vmatprep.subr.mxu0 0.0
    %664 = vmatpush1.msra.mxu0 0.0
    %665 = vmatprep.subr.mxu0 0.0
    %666 = vmatpush1.msra.mxu0 0.0
    %667 = vmatprep.subr.mxu0 0.0
    %668 = vmatpush1.msra.mxu0 0.0
    %669 = vmatprep.subr.mxu0 0.0
    %670 = vmatpush1.msra.mxu0 0.0
    %671 = vmatprep.mubr.f32.mxu0 0.0
    %672 = vmatmul.mubr.f32.gmra.mrb[0].mxu0 %v605
    %v673 = vpop.f32.mrb[0].mxu0
    %v674 = vadd.f32 0.0, %v673
    %v675 = vpop.f32.mrb[0].mxu0
    %676 = vdwg.mxu0
    %v678 = vsel %vm405, %v449, 0
    %680 = vmatprep.subr.mxu0 0.0
    %681 = vmatpush1.msra.mxu0 %v457
    %682 = vmatprep.subr.mxu0 0.0
    %683 = vmatpush1.msra.mxu0 0.0
    %684 = vmatprep.subr.mxu0 0.0
    %685 = vmatpush1.msra.mxu0 0.0
    %686 = vmatprep.subr.mxu0 0.0
    %687 = vmatpush1.msra.mxu0 0.0
    %688 = vmatprep.subr.mxu0 0.0
    %689 = vmatpush1.msra.mxu0 0.0
    %690 = vmatprep.subr.mxu0 0.0
    %691 = vmatpush1.msra.mxu0 0.0
    %692 = vmatprep.subr.mxu0 0.0
    %693 = vmatpush1.msra.mxu0 0.0
    %694 = vmatprep.subr.mxu0 0.0
    %695 = vmatpush1.msra.mxu0 0.0
    %696 = vmatprep.subr.mxu0 0.0
    %697 = vmatpush1.msra.mxu0 0.0
    %698 = vmatprep.subr.mxu0 0.0
    %699 = vmatpush1.msra.mxu0 0.0
    %700 = vmatprep.subr.mxu0 0.0
    %701 = vmatpush1.msra.mxu0 0.0
    %702 = vmatprep.subr.mxu0 0.0
    %703 = vmatpush1.msra.mxu0 0.0
    %704 = vmatprep.subr.mxu0 0.0
    %705 = vmatpush1.msra.mxu0 0.0
    %706 = vmatprep.subr.mxu0 0.0
    %707 = vmatpush1.msra.mxu0 0.0
    %708 = vmatprep.subr.mxu0 0.0
    %709 = vmatpush1.msra.mxu0 0.0
    %710 = vmatprep.subr.mxu0 0.0
    %711 = vmatpush1.msra.mxu0 0.0
    %712 = vmatprep.subr.mxu0 0.0
    %713 = vmatpush1.msra.mxu0 0.0
    %714 = vmatprep.subr.mxu0 0.0
    %715 = vmatpush1.msra.mxu0 0.0
    %716 = vmatprep.subr.mxu0 0.0
    %717 = vmatpush1.msra.mxu0 0.0
    %718 = vmatprep.subr.mxu0 0.0
    %719 = vmatpush1.msra.mxu0 0.0
    %720 = vmatprep.subr.mxu0 0.0
    %721 = vmatpush1.msra.mxu0 0.0
    %722 = vmatprep.subr.mxu0 0.0
    %723 = vmatpush1.msra.mxu0 0.0
    %724 = vmatprep.subr.mxu0 0.0
    %725 = vmatpush1.msra.mxu0 0.0
    %726 = vmatprep.subr.mxu0 0.0
    %727 = vmatpush1.msra.mxu0 0.0
    %728 = vmatprep.subr.mxu0 0.0
    %729 = vmatpush1.msra.mxu0 0.0
    %730 = vmatprep.subr.mxu0 0.0
    %731 = vmatpush1.msra.mxu0 0.0
    %732 = vmatprep.subr.mxu0 0.0
    %733 = vmatpush1.msra.mxu0 0.0
    %734 = vmatprep.subr.mxu0 0.0
    %735 = vmatpush1.msra.mxu0 0.0
    %736 = vmatprep.subr.mxu0 0.0
    %737 = vmatpush1.msra.mxu0 0.0
    %738 = vmatprep.subr.mxu0 0.0
    %739 = vmatpush1.msra.mxu0 0.0
    %740 = vmatprep.subr.mxu0 0.0
    %741 = vmatpush1.msra.mxu0 0.0
    %742 = vmatprep.subr.mxu0 0.0
    %743 = vmatpush1.msra.mxu0 0.0
    %744 = vmatprep.mubr.f32.mxu0 0.0
    %745 = vmatmul.mubr.f32.gmra.mrb[0].mxu0 %v678
    %v746 = vpop.f32.mrb[0].mxu0
    %v747 = vadd.f32 0.0, %v746
    %v748 = vpop.f32.mrb[0].mxu0
    %749 = vdwg.mxu0
    %750 = vst.msk [vmem:[#allocation10] sm:$0xff] %vm84, %v528
    %751 = vst.msk [vmem:[#allocation10 + $0x8] sm:$0xff] %vm84, %v601
    %752 = vst.msk [vmem:[#allocation10 + $0x10] sm:$0xff] %vm84, %v674
    %753 = vst.msk [vmem:[#allocation10 + $0x18] sm:$0xff] %vm84, %v747
    // Predicated region
    $region34: #{tpu_custom_call.1} parent=1 // pred_check
      _
    $region35: #{tpu_custom_call.1} parent=1 // pred_check_branch
      %755 = sbr.rel (0) target = $region37
    $region36: #{tpu_custom_call.1} parent=1 // pred_region
      %s757 = ssub.s32 512, 512
      %758 = vsyncadd [#allocation4], %s757
      %s759 = sshll.u32 [#allocation10], 4
      %s760 = int_to_ptr.vmem [resolvable:$true] %s759
      %765 = dma.vmem_to_hbm [thread:$0]  %s760, 512, %s4, [#allocation4], 128, 128, 8
    $region37: #{tpu_custom_call.1} parent=1 // pred_fallthru
      _
    // Predicated region
    $region38: #{tpu_custom_call.1} parent=1 // pred_check
      _
    $region39: #{tpu_custom_call.1} parent=1 // pred_check_branch
      %767 = sbr.rel (0) target = $region41
    $region40: #{tpu_custom_call.1} parent=1 // pred_region
      %s769 = ssub.s32 512, 512
      %770 = vsyncadd [#allocation12], %s769
      %s771 = sshll.u32 [#allocation11], 4
      %s772 = int_to_ptr.vmem [resolvable:$true] %s771
      %777 = dma.vmem_to_hbm [thread:$0]  %s772, 512, %s5, [#allocation12], 128, 128, 8
    $region41: #{tpu_custom_call.1} parent=1 // pred_fallthru
      _
    // Predicated region
    $region42: #{tpu_custom_call.1} parent=1 // pred_check
      _
    $region43: #{tpu_custom_call.1} parent=1 // pred_check_branch
      %779 = sbr.rel (0) target = $region45
    $region44: #{tpu_custom_call.1} parent=1 // pred_region
      %780 = dma.done [#allocation4], 512
    $region45: #{tpu_custom_call.1} parent=1 // pred_fallthru
      _
    // Predicated region
    $region46: #{tpu_custom_call.1} parent=1 // pred_check
      _
    $region47: #{tpu_custom_call.1} parent=1 // pred_check_branch
      %782 = sbr.rel (0) target = $region49
    $region48: #{tpu_custom_call.1} parent=1 // pred_region
      %783 = dma.done [#allocation12], 512
    $region49: #{tpu_custom_call.1} parent=1 // pred_fallthru
      _
    %784 = vsyncpa [#allocation3], 1
    %785 = vsyncpa [#allocation6], 1
    %786 = vsyncpa [#allocation9], 1
    %787 = vsyncpa [#allocation4], 1
    %788 = vsyncpa [#allocation12], 1

</llo_original>
